<compile_context>
chip_gen: v6e
topology: v6e:2x2x1
jax: 0.10.0
libtpu: 0.0.40
codegen_flags: <defaults>
</compile_context>

<pallas_src>
import functools

import jax
import jax.numpy as jnp
import numpy as np
from jax.experimental import pallas as pl
from jax.experimental.pallas import tpu as pltpu


def _residual_block_kernel(x_ref, t0_ref, b0_ref, t1_ref, b1_ref, out_ref,
                           *, h, w, cp):
    """One batch image per grid step.

    x_ref  : (h+2, (w+2)*cp) f32  spatially padded input, (W, C) on lanes
    t0_ref : (3, (w+2)*cp, w*cp)  block-Toeplitz conv0 weights (one per kh)
    t1_ref : (3, w*cp,     w*cp)  block-Toeplitz conv1 weights (one per kh)
    b0_ref : (1, w*cp)            conv0 bias tiled across W
    b1_ref : (1, w*cp)            conv1 bias tiled across W
    out_ref: (h, w*cp)
    """
    wc = w * cp
    x = x_ref[...]                         # (h+2, (w+2)*cp)
    rx = jnp.maximum(x, 0.0)               # pre-ReLU on the padded input

    # ---- conv0: out0[y] = b0 + sum_kh relu(xpad)[y+kh] @ T0[kh] ------------
    acc0 = jnp.broadcast_to(b0_ref[...], (h, wc))
    for kh in range(3):
        acc0 = acc0 + jnp.dot(rx[kh:kh + h, :], t0_ref[kh],
                              preferred_element_type=jnp.float32)
    hid = jnp.maximum(acc0, 0.0)           # (h, wc)

    # ---- conv1: horizontal halo is folded into T1; vertical halo is applied
    #      with exact 0/1 row-shift matrices (two extra tiny MXU matmuls). ----
    p0 = jnp.dot(hid, t1_ref[0], preferred_element_type=jnp.float32)
    p1 = jnp.dot(hid, t1_ref[1], preferred_element_type=jnp.float32)
    p2 = jnp.dot(hid, t1_ref[2], preferred_element_type=jnp.float32)

    row = jax.lax.broadcasted_iota(jnp.int32, (h, h), 0)
    col = jax.lax.broadcasted_iota(jnp.int32, (h, h), 1)
    shift_down = (row == col + 1).astype(jnp.float32)   # picks p[y-1]; row 0 -> 0
    shift_up = (row + 1 == col).astype(jnp.float32)     # picks p[y+1]; row h-1 -> 0

    acc1 = (jnp.broadcast_to(b1_ref[...], (h, wc)) + p1
            + jnp.dot(shift_down, p0, preferred_element_type=jnp.float32)
            + jnp.dot(shift_up, p2, preferred_element_type=jnp.float32))

    # ---- residual add with the original (un-activated) input ---------------
    residual = x[1:h + 1, cp:(w + 1) * cp]               # (h, wc)
    out_ref[...] = acc1 + residual


def _conv_row_toeplitz(wk, w, in_pixels, shift):
    """Per-kh block-Toeplitz matrices for a 3x3 conv on a (rows, W*C) layout.

    wk : (3, 3, ci, co) weights indexed [kh, kw, c_in, c_out].
    Returns T of shape (3, in_pixels*ci, w*co) with
      T[kh, r*ci + i, x*co + o] = wk[kh, kw, i, o]   where r = x + kw + shift,
    and entries with r outside [0, in_pixels) dropped (implicit zero padding).
    """
    _, _, ci, co = wk.shape
    place = np.zeros((3, in_pixels, w), np.float32)
    for kw in range(3):
        for x in range(w):
            r = x + kw + shift
            if 0 <= r < in_pixels:
                place[kw, r, x] = 1.0
    t = jnp.einsum("arx,haio->hrixo", jnp.asarray(place), wk)
    return t.reshape(3, in_pixels * ci, w * co)


def _padded_channels(c, w):
    """Smallest cp >= c such that w*cp is a multiple of 128 (lane-dense)."""
    if (w * c) % 128 == 0:
        return c
    target = ((w * c + 127) // 128) * 128
    if target % w == 0:
        return target // w
    return c   # fall back to full-dim last axis (still a legal block shape)


def residual_block(x_nchw, w0_oihw, b0, w1_oihw, b1):
    """Pallas TPU implementation of ResidualBlock.forward (NCHW in/out)."""
    n, c, h, w = x_nchw.shape
    cp = _padded_channels(c, w)
    wc = w * cp

    # --- layout prep (plain JAX glue outside the kernel) --------------------
    # NCHW -> NHWC, zero-pad channels to cp, pad H/W by 1, flatten (W,C) lanes.
    x_nhwc = jnp.transpose(x_nchw, (0, 2, 3, 1)).astype(jnp.float32)
    x_nhwc = jnp.pad(x_nhwc, ((0, 0), (1, 1), (1, 1), (0, cp - c)))
    x2d = x_nhwc.reshape(n, h + 2, (w + 2) * cp)

    def repack(w_oihw):
        wk = jnp.transpose(w_oihw, (2, 3, 1, 0)).astype(jnp.float32)  # kh,kw,ci,co
        return jnp.pad(wk, ((0, 0), (0, 0), (0, cp - c), (0, cp - c)))

    t0 = _conv_row_toeplitz(repack(w0_oihw), w, in_pixels=w + 2, shift=0)
    t1 = _conv_row_toeplitz(repack(w1_oihw), w, in_pixels=w, shift=-1)
    b0r = jnp.tile(jnp.pad(b0.astype(jnp.float32), (0, cp - c)), w).reshape(1, wc)
    b1r = jnp.tile(jnp.pad(b1.astype(jnp.float32), (0, cp - c)), w).reshape(1, wc)

    kernel = functools.partial(_residual_block_kernel, h=h, w=w, cp=cp)

    out2d = pl.pallas_call(
        kernel,
        out_shape=jax.ShapeDtypeStruct((n, h, wc), jnp.float32),
        grid_spec=pltpu.PrefetchScalarGridSpec(
            num_scalar_prefetch=0,
            grid=(n,),
            in_specs=[
                pl.BlockSpec((None, h + 2, (w + 2) * cp), lambda i: (i, 0, 0)),
                pl.BlockSpec((3, (w + 2) * cp, wc), lambda i: (0, 0, 0)),
                pl.BlockSpec((1, wc), lambda i: (0, 0)),
                pl.BlockSpec((3, wc, wc), lambda i: (0, 0, 0)),
                pl.BlockSpec((1, wc), lambda i: (0, 0)),
            ],
            out_specs=pl.BlockSpec((None, h, wc), lambda i: (i, 0, 0)),
        ),
        compiler_params=pltpu.CompilerParams(
            dimension_semantics=("parallel",),
            vmem_limit_bytes=48 * 1024 * 1024,
        ),
    )(x2d, t0, b0r, t1, b1r)

    out = out2d.reshape(n, h, w, cp)[..., :c]
    return jnp.transpose(out, (0, 3, 1, 2)).astype(x_nchw.dtype)


def _reference(x_nchw, w0, b0, w1, b1):
    """Pure-JAX reference matching the PyTorch forward exactly (NCHW/OIHW)."""
    def conv(x, wgt, bias):
        y = jax.lax.conv_general_dilated(
            x, wgt, window_strides=(1, 1), padding="SAME",
            dimension_numbers=("NCHW", "OIHW", "NCHW"))
        return y + bias[None, :, None, None]

    hmid = conv(jax.nn.relu(x_nchw), w0, b0)
    y = conv(jax.nn.relu(hmid), w1, b1)
    return y + x_nchw


if __name__ == "__main__":
    N, C, H, W = 2, 4, 16, 16
    key = jax.random.PRNGKey(0)
    kx, kw0, kb0, kw1, kb1 = jax.random.split(key, 5)

    def bf16_exact(a):
        # Round test data to bf16-representable f32 values so the kernel/
        # reference comparison is insensitive to the MXU's f32 pass config.
        return a.astype(jnp.bfloat16).astype(jnp.float32)

    x = bf16_exact(jax.random.normal(kx, (N, C, H, W), jnp.float32))
    # Synthetic nn.Conv2d(channels, channels, 3, padding=1) parameters (OIHW).
    w0 = bf16_exact(jax.random.normal(kw0, (C, C, 3, 3), jnp.float32) * 0.1)
    b0 = bf16_exact(jax.random.normal(kb0, (C,), jnp.float32) * 0.1)
    w1 = bf16_exact(jax.random.normal(kw1, (C, C, 3, 3), jnp.float32) * 0.1)
    b1 = bf16_exact(jax.random.normal(kb1, (C,), jnp.float32) * 0.1)

    out = jax.block_until_ready(residual_block(x, w0, b0, w1, b1))
    ref = jax.block_until_ready(_reference(x, w0, b0, w1, b1))

    assert out.shape == x.shape and out.dtype == x.dtype
    np.testing.assert_allclose(np.asarray(out), np.asarray(ref),
                               atol=1e-4, rtol=1e-4)
    print("KERNEL_OK")
</pallas_src>

<mosaic_0001>
module attributes {stable_mosaic.version = 11 : i64} {
  func.func @_residual_block_kernel(%arg0: i32, %arg1: memref<1x18x144xf32, #tpu.memory_space<vmem>>, %arg2: memref<3x144x128xf32, #tpu.memory_space<vmem>>, %arg3: memref<1x128xf32, #tpu.memory_space<vmem>>, %arg4: memref<3x128x128xf32, #tpu.memory_space<vmem>>, %arg5: memref<1x128xf32, #tpu.memory_space<vmem>>, %arg6: memref<1x16x128xf32, #tpu.memory_space<vmem>>) attributes {dimension_semantics = [#tpu.dimension_semantics<parallel>], iteration_bounds = array<i64: 2>, scalar_prefetch = 0 : i64, scratch_operands = 0 : i64, tpu.core_type = #tpu.core_type<tc>, window_params = [{transform_indices = @transform_0, window_bounds = array<i64: 1, 18, 144>}, {pipeline_mode = #tpu.pipeline_mode<synchronous>, transform_indices = @transform_1, window_bounds = array<i64: 3, 144, 128>}, {pipeline_mode = #tpu.pipeline_mode<synchronous>, transform_indices = @transform_2, window_bounds = array<i64: 1, 128>}, {pipeline_mode = #tpu.pipeline_mode<synchronous>, transform_indices = @transform_3, window_bounds = array<i64: 3, 128, 128>}, {pipeline_mode = #tpu.pipeline_mode<synchronous>, transform_indices = @transform_4, window_bounds = array<i64: 1, 128>}, {transform_indices = @transform_5, window_bounds = array<i64: 1, 16, 128>}]} {
    %c0 = arith.constant 0 : index
    %c0_0 = arith.constant 0 : index
    %c0_1 = arith.constant 0 : index
    %0 = vector.load %arg1[%c0, %c0_0, %c0_1] : memref<1x18x144xf32, #tpu.memory_space<vmem>>, vector<1x18x144xf32>
    %1 = vector.shape_cast %0 : vector<1x18x144xf32> to vector<18x144xf32>
    %cst = arith.constant 0.000000e+00 : f32
    %2 = vector.broadcast %cst : f32 to vector<18x144xf32>
    %3 = arith.maximumf %1, %2 : vector<18x144xf32>
    %c0_2 = arith.constant 0 : index
    %c0_3 = arith.constant 0 : index
    %4 = vector.load %arg3[%c0_2, %c0_3] : memref<1x128xf32, #tpu.memory_space<vmem>>, vector<1x128xf32>
    %5 = vector.shape_cast %4 : vector<1x128xf32> to vector<1x128xf32>
    %6 = vector.broadcast %5 : vector<1x128xf32> to vector<16x128xf32>
    %7 = vector.extract_strided_slice %3 {offsets = [0, 0], sizes = [16, 144], strides = [1, 1]} : vector<18x144xf32> to vector<16x144xf32>
    %c0_4 = arith.constant 0 : index
    %c0_5 = arith.constant 0 : index
    %c0_6 = arith.constant 0 : index
    %8 = vector.load %arg2[%c0_4, %c0_5, %c0_6] : memref<3x144x128xf32, #tpu.memory_space<vmem>>, vector<1x144x128xf32>
    %9 = vector.shape_cast %8 : vector<1x144x128xf32> to vector<144x128xf32>
    %cst_7 = arith.constant dense<0.000000e+00> : vector<16x128xf32>
    %10 = tpu.matmul %7, %9, %cst_7 {dimension_numbers = #tpu.dot_dimension_numbers<[1], [0], [0], [1], [0, 0, 1, 1], [], []>} : vector<16x144xf32>, vector<144x128xf32>, vector<16x128xf32> -> vector<16x128xf32>
    %11 = arith.addf %6, %10 : vector<16x128xf32>
    %12 = vector.extract_strided_slice %3 {offsets = [1, 0], sizes = [16, 144], strides = [1, 1]} : vector<18x144xf32> to vector<16x144xf32>
    %c1 = arith.constant 1 : index
    %c0_8 = arith.constant 0 : index
    %c0_9 = arith.constant 0 : index
    %13 = vector.load %arg2[%c1, %c0_8, %c0_9] : memref<3x144x128xf32, #tpu.memory_space<vmem>>, vector<1x144x128xf32>
    %14 = vector.shape_cast %13 : vector<1x144x128xf32> to vector<144x128xf32>
    %cst_10 = arith.constant dense<0.000000e+00> : vector<16x128xf32>
    %15 = tpu.matmul %12, %14, %cst_10 {dimension_numbers = #tpu.dot_dimension_numbers<[1], [0], [0], [1], [0, 0, 1, 1], [], []>} : vector<16x144xf32>, vector<144x128xf32>, vector<16x128xf32> -> vector<16x128xf32>
    %16 = arith.addf %11, %15 : vector<16x128xf32>
    %17 = vector.extract_strided_slice %3 {offsets = [2, 0], sizes = [16, 144], strides = [1, 1]} : vector<18x144xf32> to vector<16x144xf32>
    %c2 = arith.constant 2 : index
    %c0_11 = arith.constant 0 : index
    %c0_12 = arith.constant 0 : index
    %18 = vector.load %arg2[%c2, %c0_11, %c0_12] : memref<3x144x128xf32, #tpu.memory_space<vmem>>, vector<1x144x128xf32>
    %19 = vector.shape_cast %18 : vector<1x144x128xf32> to vector<144x128xf32>
    %cst_13 = arith.constant dense<0.000000e+00> : vector<16x128xf32>
    %20 = tpu.matmul %17, %19, %cst_13 {dimension_numbers = #tpu.dot_dimension_numbers<[1], [0], [0], [1], [0, 0, 1, 1], [], []>} : vector<16x144xf32>, vector<144x128xf32>, vector<16x128xf32> -> vector<16x128xf32>
    %21 = arith.addf %16, %20 : vector<16x128xf32>
    %cst_14 = arith.constant 0.000000e+00 : f32
    %22 = vector.broadcast %cst_14 : f32 to vector<16x128xf32>
    %23 = arith.maximumf %21, %22 : vector<16x128xf32>
    %c0_15 = arith.constant 0 : index
    %c0_16 = arith.constant 0 : index
    %c0_17 = arith.constant 0 : index
    %24 = vector.load %arg4[%c0_15, %c0_16, %c0_17] : memref<3x128x128xf32, #tpu.memory_space<vmem>>, vector<1x128x128xf32>
    %25 = vector.shape_cast %24 : vector<1x128x128xf32> to vector<128x128xf32>
    %cst_18 = arith.constant dense<0.000000e+00> : vector<16x128xf32>
    %26 = tpu.matmul %23, %25, %cst_18 {dimension_numbers = #tpu.dot_dimension_numbers<[1], [0], [0], [1], [0, 0, 1, 1], [], []>} : vector<16x128xf32>, vector<128x128xf32>, vector<16x128xf32> -> vector<16x128xf32>
    %c1_19 = arith.constant 1 : index
    %c0_20 = arith.constant 0 : index
    %c0_21 = arith.constant 0 : index
    %27 = vector.load %arg4[%c1_19, %c0_20, %c0_21] : memref<3x128x128xf32, #tpu.memory_space<vmem>>, vector<1x128x128xf32>
    %28 = vector.shape_cast %27 : vector<1x128x128xf32> to vector<128x128xf32>
    %cst_22 = arith.constant dense<0.000000e+00> : vector<16x128xf32>
    %29 = tpu.matmul %23, %28, %cst_22 {dimension_numbers = #tpu.dot_dimension_numbers<[1], [0], [0], [1], [0, 0, 1, 1], [], []>} : vector<16x128xf32>, vector<128x128xf32>, vector<16x128xf32> -> vector<16x128xf32>
    %c2_23 = arith.constant 2 : index
    %c0_24 = arith.constant 0 : index
    %c0_25 = arith.constant 0 : index
    %30 = vector.load %arg4[%c2_23, %c0_24, %c0_25] : memref<3x128x128xf32, #tpu.memory_space<vmem>>, vector<1x128x128xf32>
    %31 = vector.shape_cast %30 : vector<1x128x128xf32> to vector<128x128xf32>
    %cst_26 = arith.constant dense<0.000000e+00> : vector<16x128xf32>
    %32 = tpu.matmul %23, %31, %cst_26 {dimension_numbers = #tpu.dot_dimension_numbers<[1], [0], [0], [1], [0, 0, 1, 1], [], []>} : vector<16x128xf32>, vector<128x128xf32>, vector<16x128xf32> -> vector<16x128xf32>
    %33 = tpu.iota {dimensions = array<i32: 0>} : vector<16x16xi32>
    %34 = tpu.iota {dimensions = array<i32: 1>} : vector<16x16xi32>
    %c1_i32 = arith.constant 1 : i32
    %35 = vector.broadcast %c1_i32 : i32 to vector<16x16xi32>
    %36 = arith.addi %34, %35 : vector<16x16xi32>
    %37 = arith.cmpi eq, %33, %36 : vector<16x16xi32>
    %38 = arith.extui %37 : vector<16x16xi1> to vector<16x16xi32>
    %39 = arith.sitofp %38 : vector<16x16xi32> to vector<16x16xf32>
    %c1_i32_27 = arith.constant 1 : i32
    %40 = vector.broadcast %c1_i32_27 : i32 to vector<16x16xi32>
    %41 = arith.addi %33, %40 : vector<16x16xi32>
    %42 = arith.cmpi eq, %41, %34 : vector<16x16xi32>
    %43 = arith.extui %42 : vector<16x16xi1> to vector<16x16xi32>
    %44 = arith.sitofp %43 : vector<16x16xi32> to vector<16x16xf32>
    %c0_28 = arith.constant 0 : index
    %c0_29 = arith.constant 0 : index
    %45 = vector.load %arg5[%c0_28, %c0_29] : memref<1x128xf32, #tpu.memory_space<vmem>>, vector<1x128xf32>
    %46 = vector.shape_cast %45 : vector<1x128xf32> to vector<1x128xf32>
    %47 = vector.broadcast %46 : vector<1x128xf32> to vector<16x128xf32>
    %48 = arith.addf %47, %29 : vector<16x128xf32>
    %cst_30 = arith.constant dense<0.000000e+00> : vector<16x128xf32>
    %49 = tpu.matmul %39, %26, %cst_30 {dimension_numbers = #tpu.dot_dimension_numbers<[1], [0], [0], [1], [0, 0, 1, 1], [], []>} : vector<16x16xf32>, vector<16x128xf32>, vector<16x128xf32> -> vector<16x128xf32>
    %50 = arith.addf %48, %49 : vector<16x128xf32>
    %cst_31 = arith.constant dense<0.000000e+00> : vector<16x128xf32>
    %51 = tpu.matmul %44, %32, %cst_31 {dimension_numbers = #tpu.dot_dimension_numbers<[1], [0], [0], [1], [0, 0, 1, 1], [], []>} : vector<16x16xf32>, vector<16x128xf32>, vector<16x128xf32> -> vector<16x128xf32>
    %52 = arith.addf %50, %51 : vector<16x128xf32>
    %53 = vector.extract_strided_slice %1 {offsets = [1, 8], sizes = [16, 128], strides = [1, 1]} : vector<18x144xf32> to vector<16x128xf32>
    %54 = arith.addf %52, %53 : vector<16x128xf32>
    %c0_32 = arith.constant 0 : index
    %c0_33 = arith.constant 0 : index
    %c0_34 = arith.constant 0 : index
    %55 = vector.load %arg6[%c0_32, %c0_33, %c0_34] : memref<1x16x128xf32, #tpu.memory_space<vmem>>, vector<1x16x128xf32>
    %56 = vector.shape_cast %55 : vector<1x16x128xf32> to vector<16x128xf32>
    %57 = vector.shape_cast %54 : vector<16x128xf32> to vector<1x16x128xf32>
    tpu.vector_store %arg6[%c0_32, %c0_33, %c0_34], %57 {strides = array<i32>} : memref<1x16x128xf32, #tpu.memory_space<vmem>>, vector<1x16x128xf32>,
    return
  }
  func.func @transform_0(%arg0: i32) -> (i32, i32, i32) {
    %c0_i32 = arith.constant 0 : i32
    %c0_i32_0 = arith.constant 0 : i32
    %c0_i32_1 = arith.constant 0 : i32
    return %arg0, %c0_i32, %c0_i32_0 : i32, i32, i32
  }
  func.func @transform_1(%arg0: i32) -> (i32, i32, i32) {
    %c0_i32 = arith.constant 0 : i32
    %c0_i32_0 = arith.constant 0 : i32
    %c0_i32_1 = arith.constant 0 : i32
    %c0_i32_2 = arith.constant 0 : i32
    return %c0_i32, %c0_i32_0, %c0_i32_1 : i32, i32, i32
  }
  func.func @transform_2(%arg0: i32) -> (i32, i32) {
    %c0_i32 = arith.constant 0 : i32
    %c0_i32_0 = arith.constant 0 : i32
    %c0_i32_1 = arith.constant 0 : i32
    return %c0_i32, %c0_i32_0 : i32, i32
  }
  func.func @transform_3(%arg0: i32) -> (i32, i32, i32) {
    %c0_i32 = arith.constant 0 : i32
    %c0_i32_0 = arith.constant 0 : i32
    %c0_i32_1 = arith.constant 0 : i32
    %c0_i32_2 = arith.constant 0 : i32
    return %c0_i32, %c0_i32_0, %c0_i32_1 : i32, i32, i32
  }
  func.func @transform_4(%arg0: i32) -> (i32, i32) {
    %c0_i32 = arith.constant 0 : i32
    %c0_i32_0 = arith.constant 0 : i32
    %c0_i32_1 = arith.constant 0 : i32
    return %c0_i32, %c0_i32_0 : i32, i32
  }
  func.func @transform_5(%arg0: i32) -> (i32, i32, i32) {
    %c0_i32 = arith.constant 0 : i32
    %c0_i32_0 = arith.constant 0 : i32
    %c0_i32_1 = arith.constant 0 : i32
    return %arg0, %c0_i32, %c0_i32_0 : i32, i32, i32
  }
}

</mosaic_0001>

<llo_original>
// kernel: tpu_custom_call.1
$region0: #{tpu_custom_call.1}
  #allocation0 [shape = 'u32[]', space=smem, size = 0x4, offset = 0x4, fixed_abs, tag = 'smem constant byte address 0x4 - core index']
  #allocation1 [shape = 'u32[144,128]{1,0:T(1,128)}', space=vmem, size = 0x12000, scoped, tag = 'internal scratch']
  %s0 = inlined_call_operand.vmem [shape: f32[2,18,144], index: 0, kind: input, shape index: {}]
  %s1 = inlined_call_operand.hbm [shape: f32[3,144,128], index: 1, kind: input, shape index: {}]
  %s2 = inlined_call_operand.vmem [shape: f32[1,128], index: 2, kind: input, shape index: {}]
  %s3 = inlined_call_operand.hbm [shape: f32[3,128,128], index: 3, kind: input, shape index: {}]
  %s4 = inlined_call_operand.vmem [shape: f32[1,128], index: 4, kind: input, shape index: {}]
  %s5 = inlined_call_operand.hbm [shape: f32[2,16,128], index: 5, kind: output, shape index: {}]
  %s6 = sld [smem:[#allocation0]]
  $region61: #{tpu_custom_call.1} parent=0
    _
  %s8 = ssub.s32 1, %s6
  %s9 = scalar_select 0, %s8, %s6
  $region1: #{tpu_custom_call.1} parent=0
    #allocation2 [shape = 'u8[221184]{0}', space=vmem, size = 0x36000, scoped, tag = 'input window, operand 1, single buffered']
    #allocation3 [shape = 's32[2]{0}', space=sflag, size = 0x8, scoped, tag = 'scoped memory for tpu_custom_call.1']
    #allocation4 [shape = 's32[2]{0}', space=sflag, size = 0x8, scoped, tag = 'scoped memory for tpu_custom_call.1']
    #allocation5 [shape = 'u8[196608]{0}', space=vmem, size = 0x30000, scoped, tag = 'input window, operand 3, single buffered']
    #allocation6 [shape = 's32[1]{0}', space=sflag, size = 0x4, scoped, tag = 'scoped memory for tpu_custom_call.1']
    #allocation7 [shape = 'u8[16384]{0}', space=vmem, size = 0x4000, scoped, tag = 'output window, operand 0']
    %10 = vsyncpa [#allocation3], 0
    %11 = vsyncpa [#allocation6], 0
    %12 = vsyncpa [#allocation4], 0
    %s13 = scalar_lea.sflag [#allocation4], 1
    %14 = vsyncpa %s13, 0
    loop: start=0, step=1, limit=4
    $region2: #{tpu_custom_call.1} parent=1 // loop_pre_header
      _
    $region3: #{tpu_custom_call.1} parent=1 // loop_header
      %s16 = sphi 0, %s20
      %p17 = scmp.ge.s32.totalorder %s16, 4
      %s26 = sphi 0, %s28
      %s29 = sphi 0, %s26
      %s30 = sphi 0, %s29
      %s46 = sphi 0, %s30
      %s50 = sphi 0, %s50
      %s52 = sphi 0, %s50
      %s53 = sphi 0, %s52
      %s67 = sphi 0, %s53
      %s71 = sphi 0, %s71
      %s73 = sphi 0, %s71
      %s74 = sphi 0, %s73
      %s88 = sphi 0, %s74
      %s92 = sphi 0, %s92
      %s94 = sphi 0, %s92
      %s95 = sphi 0, %s94
      %s109 = sphi 0, %s95
      %s113 = sphi 0, %s113
      %s115 = sphi 0, %s113
      %s116 = sphi 0, %s115
      %s130 = sphi 0, %s116
      %s136 = sphi 0, %s138
      %s139 = sphi 0, %s136
      %s140 = sphi 0, %s139
      %s156 = sphi 0, %s140
    $region4: #{tpu_custom_call.1} parent=1 // loop_header_branch
      %19 = sbr.rel (%p17) target = $region8
    $region5: #{tpu_custom_call.1} parent=1 // loop_body
      %s21 = ssub.s32 %s16, 1
      %s22 = ssub.s32 %s16, 2
      %s23 = sadd.s32 %s16, 1
      %s24 = ssub.s32 %s16, %s23
      %p25 = scmp.eq.s32.totalorder %s24, 0
      %s27 = sadd.s32 %s26, 1
      %s28 = scalar_select %p25, %s26, %s27
      %p31 = pneg %p25
      %p32 = scmp.eq.s32.totalorder %s16, 1
      %p33 = por %p31, %p32
      %p34 = scmp.ne.s32.totalorder %s26, %s29
      %p35 = scmp.eq.s32.totalorder %s16, 0
      %p36 = por %p34, %p35
      %p37 = scmp.ne.s32.totalorder %s26, %s29
      %p38 = scmp.eq.s32.totalorder %s21, 1
      %p39 = por %p37, %p38
      %p40 = scmp.ne.s32.totalorder %s29, %s30
      %p41 = scmp.eq.s32.totalorder %s21, 0
      %p42 = por %p40, %p41
      %p43 = scmp.ne.s32.totalorder %s29, %s30
      %p44 = scmp.eq.s32.totalorder %s22, 1
      %p45 = por %p43, %p44
      %p47 = scmp.ne.s32.totalorder %s30, %s46
      %p48 = scmp.eq.s32.totalorder %s22, 0
      %p49 = por %p47, %p48
      %s51 = sadd.s32 %s50, 1
      %p54 = scmp.eq.s32.totalorder %s16, 1
      %p55 = scmp.ne.s32.totalorder %s50, %s52
      %p56 = scmp.eq.s32.totalorder %s16, 0
      %p57 = por %p55, %p56
      %p58 = scmp.ne.s32.totalorder %s50, %s52
      %p59 = scmp.eq.s32.totalorder %s21, 1
      %p60 = por %p58, %p59
      %p61 = scmp.ne.s32.totalorder %s52, %s53
      %p62 = scmp.eq.s32.totalorder %s21, 0
      %p63 = por %p61, %p62
      %p64 = scmp.ne.s32.totalorder %s52, %s53
      %p65 = scmp.eq.s32.totalorder %s22, 1
      %p66 = por %p64, %p65
      %p68 = scmp.ne.s32.totalorder %s53, %s67
      %p69 = scmp.eq.s32.totalorder %s22, 0
      %p70 = por %p68, %p69
      %s72 = sadd.s32 %s71, 1
      %p75 = scmp.eq.s32.totalorder %s16, 1
      %p76 = scmp.ne.s32.totalorder %s71, %s73
      %p77 = scmp.eq.s32.totalorder %s16, 0
      %p78 = por %p76, %p77
      %p79 = scmp.ne.s32.totalorder %s71, %s73
      %p80 = scmp.eq.s32.totalorder %s21, 1
      %p81 = por %p79, %p80
      %p82 = scmp.ne.s32.totalorder %s73, %s74
      %p83 = scmp.eq.s32.totalorder %s21, 0
      %p84 = por %p82, %p83
      %p85 = scmp.ne.s32.totalorder %s73, %s74
      %p86 = scmp.eq.s32.totalorder %s22, 1
      %p87 = por %p85, %p86
      %p89 = scmp.ne.s32.totalorder %s74, %s88
      %p90 = scmp.eq.s32.totalorder %s22, 0
      %p91 = por %p89, %p90
      %s93 = sadd.s32 %s92, 1
      %p96 = scmp.eq.s32.totalorder %s16, 1
      %p97 = scmp.ne.s32.totalorder %s92, %s94
      %p98 = scmp.eq.s32.totalorder %s16, 0
      %p99 = por %p97, %p98
      %p100 = scmp.ne.s32.totalorder %s92, %s94
      %p101 = scmp.eq.s32.totalorder %s21, 1
      %p102 = por %p100, %p101
      %p103 = scmp.ne.s32.totalorder %s94, %s95
      %p104 = scmp.eq.s32.totalorder %s21, 0
      %p105 = por %p103, %p104
      %p106 = scmp.ne.s32.totalorder %s94, %s95
      %p107 = scmp.eq.s32.totalorder %s22, 1
      %p108 = por %p106, %p107
      %p110 = scmp.ne.s32.totalorder %s95, %s109
      %p111 = scmp.eq.s32.totalorder %s22, 0
      %p112 = por %p110, %p111
      %s114 = sadd.s32 %s113, 1
      %p117 = scmp.eq.s32.totalorder %s16, 1
      %p118 = scmp.ne.s32.totalorder %s113, %s115
      %p119 = scmp.eq.s32.totalorder %s16, 0
      %p120 = por %p118, %p119
      %p121 = scmp.ne.s32.totalorder %s113, %s115
      %p122 = scmp.eq.s32.totalorder %s21, 1
      %p123 = por %p121, %p122
      %p124 = scmp.ne.s32.totalorder %s115, %s116
      %p125 = scmp.eq.s32.totalorder %s21, 0
      %p126 = por %p124, %p125
      %p127 = scmp.ne.s32.totalorder %s115, %s116
      %p128 = scmp.eq.s32.totalorder %s22, 1
      %p129 = por %p127, %p128
      %p131 = scmp.ne.s32.totalorder %s116, %s130
      %p132 = scmp.eq.s32.totalorder %s22, 0
      %p133 = por %p131, %p132
      %s134 = ssub.s32 %s16, %s23
      %p135 = scmp.eq.s32.totalorder %s134, 0
      %s137 = sadd.s32 %s136, 1
      %s138 = scalar_select %p135, %s136, %s137
      %p141 = pneg %p135
      %p142 = scmp.eq.s32.totalorder %s16, 1
      %p143 = por %p141, %p142
      %p144 = scmp.ne.s32.totalorder %s136, %s139
      %p145 = scmp.eq.s32.totalorder %s16, 0
      %p146 = por %p144, %p145
      %p147 = scmp.ne.s32.totalorder %s136, %s139
      %p148 = scmp.eq.s32.totalorder %s21, 1
      %p149 = por %p147, %p148
      %p150 = scmp.ne.s32.totalorder %s139, %s140
      %p151 = scmp.eq.s32.totalorder %s21, 0
      %p152 = por %p150, %p151
      %p153 = scmp.ne.s32.totalorder %s139, %s140
      %p154 = scmp.eq.s32.totalorder %s22, 1
      %p155 = por %p153, %p154
      %p157 = scmp.ne.s32.totalorder %s140, %s156
      %p158 = scmp.eq.s32.totalorder %s22, 0
      %p159 = por %p157, %p158
      %p160 = scmp.le.s32.totalorder 1, %s16
      %p161 = scmp.lt.s32.totalorder %s16, 3
      %p162 = pnand %p160, %p161
      %p163 = pneg %p162
      // Predicated region
      $region9: #{tpu_custom_call.1} parent=5 // pred_check
        _
      $region10: #{tpu_custom_call.1} parent=5 // pred_check_branch
        %165 = sbr.rel (%p162) target = $region12
      $region11: #{tpu_custom_call.1} parent=5 // pred_region
        %s166 = ssub.s32 %s16, 1
        // Predicated region
        $region13: #{tpu_custom_call.1} parent=11 // pred_check
          %p167 = pneg %p63
        $region14: #{tpu_custom_call.1} parent=11 // pred_check_branch
          %169 = sbr.rel (%p167) target = $region16
        $region15: #{tpu_custom_call.1} parent=11 // pred_region
          %s171 = ssub.s32 6912, 6912
          %172 = vsyncadd [#allocation3], %s171
          %s173 = sshll.u32 [#allocation2], 4
          %s174 = int_to_ptr.vmem [resolvable:$true] %s173
          %179 = dma.hbm_to_vmem [thread:$0]  %s1, 6912, %s174, [#allocation3], 128, 128, 8
        $region16: #{tpu_custom_call.1} parent=11 // pred_fallthru
          _
        // Predicated region
        $region17: #{tpu_custom_call.1} parent=11 // pred_check
          %p180 = pneg %p84
        $region18: #{tpu_custom_call.1} parent=11 // pred_check_branch
          %182 = sbr.rel (%p180) target = $region20
        $region19: #{tpu_custom_call.1} parent=11 // pred_region
          _
        $region20: #{tpu_custom_call.1} parent=11 // pred_fallthru
          _
        // Predicated region
        $region21: #{tpu_custom_call.1} parent=11 // pred_check
          %p183 = pneg %p105
        $region22: #{tpu_custom_call.1} parent=11 // pred_check_branch
          %185 = sbr.rel (%p183) target = $region24
        $region23: #{tpu_custom_call.1} parent=11 // pred_region
          %s187 = ssub.s32 6144, 6144
          %188 = vsyncadd [#allocation6], %s187
          %s189 = sshll.u32 [#allocation5], 4
          %s190 = int_to_ptr.vmem [resolvable:$true] %s189
          %195 = dma.hbm_to_vmem [thread:$0]  %s3, 6144, %s190, [#allocation6], 128, 128, 8
        $region24: #{tpu_custom_call.1} parent=11 // pred_fallthru
          _
        // Predicated region
        $region25: #{tpu_custom_call.1} parent=11 // pred_check
          %p196 = pneg %p126
        $region26: #{tpu_custom_call.1} parent=11 // pred_check_branch
          %198 = sbr.rel (%p196) target = $region28
        $region27: #{tpu_custom_call.1} parent=11 // pred_region
          _
        $region28: #{tpu_custom_call.1} parent=11 // pred_fallthru
          _
      $region12: #{tpu_custom_call.1} parent=5 // pred_fallthru
        _
      %p199 = scmp.lt.s32.totalorder %s16, 2
      // Predicated region
      $region29: #{tpu_custom_call.1} parent=5 // pred_check
        %p200 = pneg %p199
      $region30: #{tpu_custom_call.1} parent=5 // pred_check_branch
        %202 = sbr.rel (%p200) target = $region32
      $region31: #{tpu_custom_call.1} parent=5 // pred_region
        // Predicated region
        $region33: #{tpu_custom_call.1} parent=31 // pred_check
          %p203 = pneg %p36
        $region34: #{tpu_custom_call.1} parent=31 // pred_check_branch
          %205 = sbr.rel (%p203) target = $region36
        $region35: #{tpu_custom_call.1} parent=31 // pred_region
          %p206 = scmp.lt.s32.totalorder %s16, 1
          %s207 = scalar_select %p206, %s16, 1
          %s208 = smul.addr %s207, 6
          %s209 = smul.addr %s208, 8
          %s210 = scalar_lea.vmem %s0, %s209
        $region36: #{tpu_custom_call.1} parent=31 // pred_fallthru
          _
      $region32: #{tpu_custom_call.1} parent=5 // pred_fallthru
        _
      %p211 = scmp.le.s32.totalorder 1, %s16
      %p212 = scmp.lt.s32.totalorder %s16, 3
      %p213 = pnand %p211, %p212
      %p214 = pneg %p213
      // Predicated region
      $region37: #{tpu_custom_call.1} parent=5 // pred_check
        _
      $region38: #{tpu_custom_call.1} parent=5 // pred_check_branch
        %216 = sbr.rel (%p213) target = $region40
      $region39: #{tpu_custom_call.1} parent=5 // pred_region
        %s217 = ssub.s32 %s16, 1
        // Predicated region
        $region41: #{tpu_custom_call.1} parent=39 // pred_check
          %p218 = pneg %p63
        $region42: #{tpu_custom_call.1} parent=39 // pred_check_branch
          %220 = sbr.rel (%p218) target = $region44
        $region43: #{tpu_custom_call.1} parent=39 // pred_region
          %221 = dma.done [#allocation3], 6912
        $region44: #{tpu_custom_call.1} parent=39 // pred_fallthru
          _
        // Predicated region
        $region45: #{tpu_custom_call.1} parent=39 // pred_check
          %p222 = pneg %p105
        $region46: #{tpu_custom_call.1} parent=39 // pred_check_branch
          %224 = sbr.rel (%p222) target = $region48
        $region47: #{tpu_custom_call.1} parent=39 // pred_region
          %225 = dma.done [#allocation6], 6144
        $region48: #{tpu_custom_call.1} parent=39 // pred_fallthru
          _
        %p226 = scmp.lt.s32.totalorder %s21, 1
        %s227 = scalar_select %p226, %s21, 1
        %s228 = smul.addr %s227, 6
        %s229 = smul.addr %s228, 8
        %s230 = scalar_lea.vmem %s0, %s229
        %p231 = pneg %p42
        %p232 = pneg %p39
        %p233 = pneg %p63
        %p234 = pneg %p60
        %p235 = pneg %p84
        %p236 = pneg %p81
        %p237 = pneg %p105
        %p238 = pneg %p102
        %p239 = pneg %p126
        %p240 = pneg %p123
        %p241 = pneg %p152
        %p242 = pneg %p149
        %s243 = sand.u32 %s139, 1
        %s244 = scalar_lea.sflag [#allocation4], %s243
        %s245 = sand.u32 %s139, 1
        %s246 = smul.addr %s245, 16
        %s247 = scalar_lea.vmem [#allocation7], %s246
        %p248 = scmp.lt.s32.totalorder %s21, 1
        %s249 = scalar_select %p248, %s21, 1
        %s250 = smul.addr %s249, 6
        %s251 = smul.addr %s250, 8
        %s252 = scalar_lea.vmem %s0, %s251
        %v253 = vld [vmem:[%s252] sm:$0xff]
        %v254 = vld [vmem:[%s252 + $0x8] sm:$0xff]
        %v255 = vld [vmem:[%s252 + $0x10] sm:$0xff]
        %v256 = vld [vmem:[%s252 + $0x18] sm:$0xff]
        %v257 = vld [vmem:[%s252 + $0x20] sm:$0x3]
        %v258 = vld [vmem:[%s252 + $0x28] sm:$0x3]
        %v259 = vmax.f32 %v253, 0.0
        %v260 = vmax.f32 %v254, 0.0
        %v261 = vmax.f32 %v255, 0.0
        %v262 = vmax.f32 %v256, 0.0
        %v263 = vmax.f32 %v257, 0.0
        %v264 = vmax.f32 %v258, 0.0
        %v265 = vld [vmem:[%s2] sm:$0x1]
        %v267 = vlaneseq
        %v268 = vshrl.u32 %v267, 7
        %v269 = vsub.s32 0, %v268
        %v270 = vrot.slane %v265, %v269
        %v272 = vld [vmem:[#allocation2] sm:$0xff]
        %v273 = vld [vmem:[#allocation2 + $0x8] sm:$0xff]
        %v274 = vld [vmem:[#allocation2 + $0x10] sm:$0xff]
        %v275 = vld [vmem:[#allocation2 + $0x18] sm:$0xff]
        %v276 = vld [vmem:[#allocation2 + $0x20] sm:$0xff]
        %v277 = vld [vmem:[#allocation2 + $0x28] sm:$0xff]
        %v278 = vld [vmem:[#allocation2 + $0x30] sm:$0xff]
        %v279 = vld [vmem:[#allocation2 + $0x38] sm:$0xff]
        %v280 = vld [vmem:[#allocation2 + $0x40] sm:$0xff]
        %v281 = vld [vmem:[#allocation2 + $0x48] sm:$0xff]
        %v282 = vld [vmem:[#allocation2 + $0x50] sm:$0xff]
        %v283 = vld [vmem:[#allocation2 + $0x58] sm:$0xff]
        %v284 = vld [vmem:[#allocation2 + $0x60] sm:$0xff]
        %v285 = vld [vmem:[#allocation2 + $0x68] sm:$0xff]
        %v286 = vld [vmem:[#allocation2 + $0x70] sm:$0xff]
        %v287 = vld [vmem:[#allocation2 + $0x78] sm:$0xff]
        %v288 = vld [vmem:[#allocation2 + $0x80] sm:$0xff]
        %v289 = vld [vmem:[#allocation2 + $0x88] sm:$0xff]
        %vm290 = vcmask 130048
        %v292 = vsel %vm290, %v260, 0
        %v295 = vsel %vm290, %v262, 0
        %297 = vmatprep.subr.mxu0 0.0
        %298 = vmatpush1.msra.mxu0 %v287
        %299 = vmatprep.subr.mxu0 0.0
        %300 = vmatpush1.msra.mxu0 %v286
        %301 = vmatprep.subr.mxu0 0.0
        %302 = vmatpush1.msra.mxu0 %v285
        %303 = vmatprep.subr.mxu0 0.0
        %304 = vmatpush1.msra.mxu0 %v284
        %305 = vmatprep.subr.mxu0 0.0
        %306 = vmatpush1.msra.mxu0 %v283
        %307 = vmatprep.subr.mxu0 0.0
        %308 = vmatpush1.msra.mxu0 %v282
        %309 = vmatprep.subr.mxu0 0.0
        %310 = vmatpush1.msra.mxu0 %v281
        %311 = vmatprep.subr.mxu0 0.0
        %312 = vmatpush1.msra.mxu0 %v280
        %313 = vmatprep.subr.mxu0 0.0
        %314 = vmatpush1.msra.mxu0 %v279
        %315 = vmatprep.subr.mxu0 0.0
        %316 = vmatpush1.msra.mxu0 %v278
        %317 = vmatprep.subr.mxu0 0.0
        %318 = vmatpush1.msra.mxu0 %v277
        %319 = vmatprep.subr.mxu0 0.0
        %320 = vmatpush1.msra.mxu0 %v276
        %321 = vmatprep.subr.mxu0 0.0
        %322 = vmatpush1.msra.mxu0 %v275
        %323 = vmatprep.subr.mxu0 0.0
        %324 = vmatpush1.msra.mxu0 %v274
        %325 = vmatprep.subr.mxu0 0.0
        %326 = vmatpush1.msra.mxu0 %v273
        %327 = vmatprep.subr.mxu0 0.0
        %328 = vmatpush1.msra.mxu0 %v272
        %329 = vmatprep.subr.mxu0 0.0
        %330 = vmatpush2.msra.mxu0 0.0
        %331 = vmatprep.subr.mxu0 0.0
        %332 = vmatpush2.msra.mxu0 0.0
        %333 = vmatprep.subr.mxu0 0.0
        %334 = vmatpush2.msra.mxu0 0.0
        %335 = vmatprep.subr.mxu0 0.0
        %336 = vmatpush2.msra.mxu0 0.0
        %337 = vmatprep.subr.mxu0 0.0
        %338 = vmatpush2.msra.mxu0 0.0
        %339 = vmatprep.subr.mxu0 0.0
        %340 = vmatpush2.msra.mxu0 0.0
        %341 = vmatprep.subr.mxu0 0.0
        %342 = vmatpush2.msra.mxu0 0.0
        %343 = vmatprep.subr.mxu0 0.0
        %344 = vmatpush2.msra.mxu0 0.0
        %345 = vmatprep.subr.mxu0 0.0
        %346 = vmatpush2.msra.mxu0 0.0
        %347 = vmatprep.subr.mxu0 0.0
        %348 = vmatpush2.msra.mxu0 0.0
        %349 = vmatprep.subr.mxu0 0.0
        %350 = vmatpush2.msra.mxu0 0.0
        %351 = vmatprep.subr.mxu0 0.0
        %352 = vmatpush2.msra.mxu0 0.0
        %353 = vmatprep.subr.mxu0 0.0
        %354 = vmatpush2.msra.mxu0 0.0
        %355 = vmatprep.subr.mxu0 0.0
        %356 = vmatpush2.msra.mxu0 0.0
        %357 = vmatprep.subr.mxu0 0.0
        %358 = vmatpush2.msra.mxu0 %v289
        %359 = vmatprep.subr.mxu0 0.0
        %360 = vmatpush2.msra.mxu0 %v288
        %361 = vmatprep.mubr.f32.mxu0 %v292
        %362 = vmatmul.mubr.f32.gmra.mxu0 %v259
        %v363 = vpop.f32.mrf.mxu0
        %v364 = vadd.f32 0.0, %v363
        %v365 = vpop.f32.mrf.mxu0
        %366 = vmatprep.mubr.f32.mxu0 %v295
        %367 = vmatmul.mubr.f32.gmra.mxu0 %v261
        %v368 = vpop.f32.mrf.mxu0
        %v369 = vadd.f32 0.0, %v368
        %v370 = vpop.f32.mrf.mxu0
        %371 = vdwg.mxu0
        %v372 = vadd.f32 %v270, %v364
        %v373 = vadd.f32 %v270, %v369
        %s374 = scalar_lea.vmem [#allocation2], 144
        %v375 = vld [vmem:[%s374] sm:$0xff]
        %v376 = vld [vmem:[%s374 + $0x8] sm:$0xff]
        %v377 = vld [vmem:[%s374 + $0x10] sm:$0xff]
        %v378 = vld [vmem:[%s374 + $0x18] sm:$0xff]
        %v379 = vld [vmem:[%s374 + $0x20] sm:$0xff]
        %v380 = vld [vmem:[%s374 + $0x28] sm:$0xff]
        %v381 = vld [vmem:[%s374 + $0x30] sm:$0xff]
        %v382 = vld [vmem:[%s374 + $0x38] sm:$0xff]
        %v383 = vld [vmem:[%s374 + $0x40] sm:$0xff]
        %v384 = vld [vmem:[%s374 + $0x48] sm:$0xff]
        %v385 = vld [vmem:[%s374 + $0x50] sm:$0xff]
        %v386 = vld [vmem:[%s374 + $0x58] sm:$0xff]
        %v387 = vld [vmem:[%s374 + $0x60] sm:$0xff]
        %v388 = vld [vmem:[%s374 + $0x68] sm:$0xff]
        %v389 = vld [vmem:[%s374 + $0x70] sm:$0xff]
        %v390 = vld [vmem:[%s374 + $0x78] sm:$0xff]
        %v391 = vld [vmem:[%s374 + $0x80] sm:$0xff]
        %v392 = vld [vmem:[%s374 + $0x88] sm:$0xff]
        %vm397 = vcmask 1046528
        %v398 = vrot.slane %v259, 1
        %v399 = vrot.slane %v261, 1
        %v400 = vsel %vm397, %v398, %v399
        %v401 = vrot.slane %v260, 1
        %v402 = vrot.slane %v262, 1
        %v403 = vsel %vm397, %v401, %v402
        %v404 = vrot.slane %v263, 1
        %v405 = vsel %vm397, %v399, %v404
        %v406 = vrot.slane %v264, 1
        %v407 = vsel %vm397, %v402, %v406
        %v410 = vsel %vm290, %v403, 0
        %v412 = vsel %vm290, %v407, 0
        %414 = vmatprep.subr.mxu0 0.0
        %415 = vmatpush1.msra.mxu0 %v390
        %416 = vmatprep.subr.mxu0 0.0
        %417 = vmatpush1.msra.mxu0 %v389
        %418 = vmatprep.subr.mxu0 0.0
        %419 = vmatpush1.msra.mxu0 %v388
        %420 = vmatprep.subr.mxu0 0.0
        %421 = vmatpush1.msra.mxu0 %v387
        %422 = vmatprep.subr.mxu0 0.0
        %423 = vmatpush1.msra.mxu0 %v386
        %424 = vmatprep.subr.mxu0 0.0
        %425 = vmatpush1.msra.mxu0 %v385
        %426 = vmatprep.subr.mxu0 0.0
        %427 = vmatpush1.msra.mxu0 %v384
        %428 = vmatprep.subr.mxu0 0.0
        %429 = vmatpush1.msra.mxu0 %v383
        %430 = vmatprep.subr.mxu0 0.0
        %431 = vmatpush1.msra.mxu0 %v382
        %432 = vmatprep.subr.mxu0 0.0
        %433 = vmatpush1.msra.mxu0 %v381
        %434 = vmatprep.subr.mxu0 0.0
        %435 = vmatpush1.msra.mxu0 %v380
        %436 = vmatprep.subr.mxu0 0.0
        %437 = vmatpush1.msra.mxu0 %v379
        %438 = vmatprep.subr.mxu0 0.0
        %439 = vmatpush1.msra.mxu0 %v378
        %440 = vmatprep.subr.mxu0 0.0
        %441 = vmatpush1.msra.mxu0 %v377
        %442 = vmatprep.subr.mxu0 0.0
        %443 = vmatpush1.msra.mxu0 %v376
        %444 = vmatprep.subr.mxu0 0.0
        %445 = vmatpush1.msra.mxu0 %v375
        %446 = vmatprep.subr.mxu0 0.0
        %447 = vmatpush2.msra.mxu0 0.0
        %448 = vmatprep.subr.mxu0 0.0
        %449 = vmatpush2.msra.mxu0 0.0
        %450 = vmatprep.subr.mxu0 0.0
        %451 = vmatpush2.msra.mxu0 0.0
        %452 = vmatprep.subr.mxu0 0.0
        %453 = vmatpush2.msra.mxu0 0.0
        %454 = vmatprep.subr.mxu0 0.0
        %455 = vmatpush2.msra.mxu0 0.0
        %456 = vmatprep.subr.mxu0 0.0
        %457 = vmatpush2.msra.mxu0 0.0
        %458 = vmatprep.subr.mxu0 0.0
        %459 = vmatpush2.msra.mxu0 0.0
        %460 = vmatprep.subr.mxu0 0.0
        %461 = vmatpush2.msra.mxu0 0.0
        %462 = vmatprep.subr.mxu0 0.0
        %463 = vmatpush2.msra.mxu0 0.0
        %464 = vmatprep.subr.mxu0 0.0
        %465 = vmatpush2.msra.mxu0 0.0
        %466 = vmatprep.subr.mxu0 0.0
        %467 = vmatpush2.msra.mxu0 0.0
        %468 = vmatprep.subr.mxu0 0.0
        %469 = vmatpush2.msra.mxu0 0.0
        %470 = vmatprep.subr.mxu0 0.0
        %471 = vmatpush2.msra.mxu0 0.0
        %472 = vmatprep.subr.mxu0 0.0
        %473 = vmatpush2.msra.mxu0 0.0
        %474 = vmatprep.subr.mxu0 0.0
        %475 = vmatpush2.msra.mxu0 %v392
        %476 = vmatprep.subr.mxu0 0.0
        %477 = vmatpush2.msra.mxu0 %v391
        %478 = vmatprep.mubr.f32.mxu0 %v410
        %479 = vmatmul.mubr.f32.gmra.mxu0 %v400
        %v480 = vpop.f32.mrf.mxu0
        %v481 = vadd.f32 0.0, %v480
        %v482 = vpop.f32.mrf.mxu0
        %483 = vmatprep.mubr.f32.mxu0 %v412
        %484 = vmatmul.mubr.f32.gmra.mxu0 %v405
        %v485 = vpop.f32.mrf.mxu0
        %v486 = vadd.f32 0.0, %v485
        %v487 = vpop.f32.mrf.mxu0
        %488 = vdwg.mxu0
        %v489 = vadd.f32 %v372, %v481
        %v490 = vadd.f32 %v373, %v486
        %s491 = scalar_lea.vmem [#allocation2], 288
        %v492 = vld [vmem:[%s491] sm:$0xff]
        %v493 = vld [vmem:[%s491 + $0x8] sm:$0xff]
        %v494 = vld [vmem:[%s491 + $0x10] sm:$0xff]
        %v495 = vld [vmem:[%s491 + $0x18] sm:$0xff]
        %v496 = vld [vmem:[%s491 + $0x20] sm:$0xff]
        %v497 = vld [vmem:[%s491 + $0x28] sm:$0xff]
        %v498 = vld [vmem:[%s491 + $0x30] sm:$0xff]
        %v499 = vld [vmem:[%s491 + $0x38] sm:$0xff]
        %v500 = vld [vmem:[%s491 + $0x40] sm:$0xff]
        %v501 = vld [vmem:[%s491 + $0x48] sm:$0xff]
        %v502 = vld [vmem:[%s491 + $0x50] sm:$0xff]
        %v503 = vld [vmem:[%s491 + $0x58] sm:$0xff]
        %v504 = vld [vmem:[%s491 + $0x60] sm:$0xff]
        %v505 = vld [vmem:[%s491 + $0x68] sm:$0xff]
        %v506 = vld [vmem:[%s491 + $0x70] sm:$0xff]
        %v507 = vld [vmem:[%s491 + $0x78] sm:$0xff]
        %v508 = vld [vmem:[%s491 + $0x80] sm:$0xff]
        %v509 = vld [vmem:[%s491 + $0x88] sm:$0xff]
        %vm510 = vcmask 1045504
        %v511 = vrot.slane %v259, 2
        %v512 = vrot.slane %v261, 2
        %v513 = vsel %vm510, %v511, %v512
        %v514 = vrot.slane %v260, 2
        %v515 = vrot.slane %v262, 2
        %v516 = vsel %vm510, %v514, %v515
        %v517 = vrot.slane %v263, 2
        %v518 = vsel %vm510, %v512, %v517
        %v519 = vrot.slane %v264, 2
        %v520 = vsel %vm510, %v515, %v519
        %v523 = vsel %vm290, %v516, 0
        %v525 = vsel %vm290, %v520, 0
        %527 = vmatprep.subr.mxu0 0.0
        %528 = vmatpush1.msra.mxu0 %v507
        %529 = vmatprep.subr.mxu0 0.0
        %530 = vmatpush1.msra.mxu0 %v506
        %531 = vmatprep.subr.mxu0 0.0
        %532 = vmatpush1.msra.mxu0 %v505
        %533 = vmatprep.subr.mxu0 0.0
        %534 = vmatpush1.msra.mxu0 %v504
        %535 = vmatprep.subr.mxu0 0.0
        %536 = vmatpush1.msra.mxu0 %v503
        %537 = vmatprep.subr.mxu0 0.0
        %538 = vmatpush1.msra.mxu0 %v502
        %539 = vmatprep.subr.mxu0 0.0
        %540 = vmatpush1.msra.mxu0 %v501
        %541 = vmatprep.subr.mxu0 0.0
        %542 = vmatpush1.msra.mxu0 %v500
        %543 = vmatprep.subr.mxu0 0.0
        %544 = vmatpush1.msra.mxu0 %v499
        %545 = vmatprep.subr.mxu0 0.0
        %546 = vmatpush1.msra.mxu0 %v498
        %547 = vmatprep.subr.mxu0 0.0
        %548 = vmatpush1.msra.mxu0 %v497
        %549 = vmatprep.subr.mxu0 0.0
        %550 = vmatpush1.msra.mxu0 %v496
        %551 = vmatprep.subr.mxu0 0.0
        %552 = vmatpush1.msra.mxu0 %v495
        %553 = vmatprep.subr.mxu0 0.0
        %554 = vmatpush1.msra.mxu0 %v494
        %555 = vmatprep.subr.mxu0 0.0
        %556 = vmatpush1.msra.mxu0 %v493
        %557 = vmatprep.subr.mxu0 0.0
        %558 = vmatpush1.msra.mxu0 %v492
        %559 = vmatprep.subr.mxu0 0.0
        %560 = vmatpush2.msra.mxu0 0.0
        %561 = vmatprep.subr.mxu0 0.0
        %562 = vmatpush2.msra.mxu0 0.0
        %563 = vmatprep.subr.mxu0 0.0
        %564 = vmatpush2.msra.mxu0 0.0
        %565 = vmatprep.subr.mxu0 0.0
        %566 = vmatpush2.msra.mxu0 0.0
        %567 = vmatprep.subr.mxu0 0.0
        %568 = vmatpush2.msra.mxu0 0.0
        %569 = vmatprep.subr.mxu0 0.0
        %570 = vmatpush2.msra.mxu0 0.0
        %571 = vmatprep.subr.mxu0 0.0
        %572 = vmatpush2.msra.mxu0 0.0
        %573 = vmatprep.subr.mxu0 0.0
        %574 = vmatpush2.msra.mxu0 0.0
        %575 = vmatprep.subr.mxu0 0.0
        %576 = vmatpush2.msra.mxu0 0.0
        %577 = vmatprep.subr.mxu0 0.0
        %578 = vmatpush2.msra.mxu0 0.0
        %579 = vmatprep.subr.mxu0 0.0
        %580 = vmatpush2.msra.mxu0 0.0
        %581 = vmatprep.subr.mxu0 0.0
        %582 = vmatpush2.msra.mxu0 0.0
        %583 = vmatprep.subr.mxu0 0.0
        %584 = vmatpush2.msra.mxu0 0.0
        %585 = vmatprep.subr.mxu0 0.0
        %586 = vmatpush2.msra.mxu0 0.0
        %587 = vmatprep.subr.mxu0 0.0
        %588 = vmatpush2.msra.mxu0 %v509
        %589 = vmatprep.subr.mxu0 0.0
        %590 = vmatpush2.msra.mxu0 %v508
        %591 = vmatprep.mubr.f32.mxu0 %v523
        %592 = vmatmul.mubr.f32.gmra.mxu0 %v513
        %v593 = vpop.f32.mrf.mxu0
        %v594 = vadd.f32 0.0, %v593
        %v595 = vpop.f32.mrf.mxu0
        %596 = vmatprep.mubr.f32.mxu0 %v525
        %597 = vmatmul.mubr.f32.gmra.mxu0 %v518
        %v598 = vpop.f32.mrf.mxu0
        %v599 = vadd.f32 0.0, %v598
        %v600 = vpop.f32.mrf.mxu0
        %601 = vdwg.mxu0
        %v602 = vadd.f32 %v489, %v594
        %v603 = vadd.f32 %v490, %v599
        %v604 = vmax.f32 %v602, 0.0
        %v605 = vmax.f32 %v603, 0.0
        %v606 = vld [vmem:[#allocation5] sm:$0xff]
        %v607 = vld [vmem:[#allocation5 + $0x8] sm:$0xff]
        %v608 = vld [vmem:[#allocation5 + $0x10] sm:$0xff]
        %v609 = vld [vmem:[#allocation5 + $0x18] sm:$0xff]
        %v610 = vld [vmem:[#allocation5 + $0x20] sm:$0xff]
        %v611 = vld [vmem:[#allocation5 + $0x28] sm:$0xff]
        %v612 = vld [vmem:[#allocation5 + $0x30] sm:$0xff]
        %v613 = vld [vmem:[#allocation5 + $0x38] sm:$0xff]
        %v614 = vld [vmem:[#allocation5 + $0x40] sm:$0xff]
        %v615 = vld [vmem:[#allocation5 + $0x48] sm:$0xff]
        %v616 = vld [vmem:[#allocation5 + $0x50] sm:$0xff]
        %v617 = vld [vmem:[#allocation5 + $0x58] sm:$0xff]
        %v618 = vld [vmem:[#allocation5 + $0x60] sm:$0xff]
        %v619 = vld [vmem:[#allocation5 + $0x68] sm:$0xff]
        %v620 = vld [vmem:[#allocation5 + $0x70] sm:$0xff]
        %v621 = vld [vmem:[#allocation5 + $0x78] sm:$0xff]
        %622 = vmatprep.subr.mxu0 0.0
        %623 = vmatpush1.msra.mxu0 %v621
        %624 = vmatprep.subr.mxu0 0.0
        %625 = vmatpush1.msra.mxu0 %v620
        %626 = vmatprep.subr.mxu0 0.0
        %627 = vmatpush1.msra.mxu0 %v619
        %628 = vmatprep.subr.mxu0 0.0
        %629 = vmatpush1.msra.mxu0 %v618
        %630 = vmatprep.subr.mxu0 0.0
        %631 = vmatpush1.msra.mxu0 %v617
        %632 = vmatprep.subr.mxu0 0.0
        %633 = vmatpush1.msra.mxu0 %v616
        %634 = vmatprep.subr.mxu0 0.0
        %635 = vmatpush1.msra.mxu0 %v615
        %636 = vmatprep.subr.mxu0 0.0
        %637 = vmatpush1.msra.mxu0 %v614
        %638 = vmatprep.subr.mxu0 0.0
        %639 = vmatpush1.msra.mxu0 %v613
        %640 = vmatprep.subr.mxu0 0.0
        %641 = vmatpush1.msra.mxu0 %v612
        %642 = vmatprep.subr.mxu0 0.0
        %643 = vmatpush1.msra.mxu0 %v611
        %644 = vmatprep.subr.mxu0 0.0
        %645 = vmatpush1.msra.mxu0 %v610
        %646 = vmatprep.subr.mxu0 0.0
        %647 = vmatpush1.msra.mxu0 %v609
        %648 = vmatprep.subr.mxu0 0.0
        %649 = vmatpush1.msra.mxu0 %v608
        %650 = vmatprep.subr.mxu0 0.0
        %651 = vmatpush1.msra.mxu0 %v607
        %652 = vmatprep.subr.mxu0 0.0
        %653 = vmatpush1.msra.mxu0 %v606
        %654 = vmatprep.subr.mxu0 0.0
        %655 = vmatpush2.msra.mxu0 0.0
        %656 = vmatprep.subr.mxu0 0.0
        %657 = vmatpush2.msra.mxu0 0.0
        %658 = vmatprep.subr.mxu0 0.0
        %659 = vmatpush2.msra.mxu0 0.0
        %660 = vmatprep.subr.mxu0 0.0
        %661 = vmatpush2.msra.mxu0 0.0
        %662 = vmatprep.subr.mxu0 0.0
        %663 = vmatpush2.msra.mxu0 0.0
        %664 = vmatprep.subr.mxu0 0.0
        %665 = vmatpush2.msra.mxu0 0.0
        %666 = vmatprep.subr.mxu0 0.0
        %667 = vmatpush2.msra.mxu0 0.0
        %668 = vmatprep.subr.mxu0 0.0
        %669 = vmatpush2.msra.mxu0 0.0
        %670 = vmatprep.subr.mxu0 0.0
        %671 = vmatpush2.msra.mxu0 0.0
        %672 = vmatprep.subr.mxu0 0.0
        %673 = vmatpush2.msra.mxu0 0.0
        %674 = vmatprep.subr.mxu0 0.0
        %675 = vmatpush2.msra.mxu0 0.0
        %676 = vmatprep.subr.mxu0 0.0
        %677 = vmatpush2.msra.mxu0 0.0
        %678 = vmatprep.subr.mxu0 0.0
        %679 = vmatpush2.msra.mxu0 0.0
        %680 = vmatprep.subr.mxu0 0.0
        %681 = vmatpush2.msra.mxu0 0.0
        %682 = vmatprep.subr.mxu0 0.0
        %683 = vmatpush2.msra.mxu0 0.0
        %684 = vmatprep.subr.mxu0 0.0
        %685 = vmatpush2.msra.mxu0 0.0
        %686 = vmatprep.mubr.f32.mxu0 0.0
        %687 = vmatmul.mubr.f32.gmra.mxu0 %v604
        %v688 = vpop.f32.mrf.mxu0
        %v689 = vadd.f32 0.0, %v688
        %v690 = vpop.f32.mrf.mxu0
        %691 = vmatprep.mubr.f32.mxu0 0.0
        %692 = vmatmul.mubr.f32.gmra.mxu0 %v605
        %v693 = vpop.f32.mrf.mxu0
        %v694 = vadd.f32 0.0, %v693
        %v695 = vpop.f32.mrf.mxu0
        %696 = vdwg.mxu0
        %s697 = scalar_lea.vmem [#allocation5], 128
        %v698 = vld [vmem:[%s697] sm:$0xff]
        %v699 = vld [vmem:[%s697 + $0x8] sm:$0xff]
        %v700 = vld [vmem:[%s697 + $0x10] sm:$0xff]
        %v701 = vld [vmem:[%s697 + $0x18] sm:$0xff]
        %v702 = vld [vmem:[%s697 + $0x20] sm:$0xff]
        %v703 = vld [vmem:[%s697 + $0x28] sm:$0xff]
        %v704 = vld [vmem:[%s697 + $0x30] sm:$0xff]
        %v705 = vld [vmem:[%s697 + $0x38] sm:$0xff]
        %v706 = vld [vmem:[%s697 + $0x40] sm:$0xff]
        %v707 = vld [vmem:[%s697 + $0x48] sm:$0xff]
        %v708 = vld [vmem:[%s697 + $0x50] sm:$0xff]
        %v709 = vld [vmem:[%s697 + $0x58] sm:$0xff]
        %v710 = vld [vmem:[%s697 + $0x60] sm:$0xff]
        %v711 = vld [vmem:[%s697 + $0x68] sm:$0xff]
        %v712 = vld [vmem:[%s697 + $0x70] sm:$0xff]
        %v713 = vld [vmem:[%s697 + $0x78] sm:$0xff]
        %714 = vmatprep.subr.mxu0 0.0
        %715 = vmatpush1.msra.mxu0 %v713
        %716 = vmatprep.subr.mxu0 0.0
        %717 = vmatpush1.msra.mxu0 %v712
        %718 = vmatprep.subr.mxu0 0.0
        %719 = vmatpush1.msra.mxu0 %v711
        %720 = vmatprep.subr.mxu0 0.0
        %721 = vmatpush1.msra.mxu0 %v710
        %722 = vmatprep.subr.mxu0 0.0
        %723 = vmatpush1.msra.mxu0 %v709
        %724 = vmatprep.subr.mxu0 0.0
        %725 = vmatpush1.msra.mxu0 %v708
        %726 = vmatprep.subr.mxu0 0.0
        %727 = vmatpush1.msra.mxu0 %v707
        %728 = vmatprep.subr.mxu0 0.0
        %729 = vmatpush1.msra.mxu0 %v706
        %730 = vmatprep.subr.mxu0 0.0
        %731 = vmatpush1.msra.mxu0 %v705
        %732 = vmatprep.subr.mxu0 0.0
        %733 = vmatpush1.msra.mxu0 %v704
        %734 = vmatprep.subr.mxu0 0.0
        %735 = vmatpush1.msra.mxu0 %v703
        %736 = vmatprep.subr.mxu0 0.0
        %737 = vmatpush1.msra.mxu0 %v702
        %738 = vmatprep.subr.mxu0 0.0
        %739 = vmatpush1.msra.mxu0 %v701
        %740 = vmatprep.subr.mxu0 0.0
        %741 = vmatpush1.msra.mxu0 %v700
        %742 = vmatprep.subr.mxu0 0.0
        %743 = vmatpush1.msra.mxu0 %v699
        %744 = vmatprep.subr.mxu0 0.0
        %745 = vmatpush1.msra.mxu0 %v698
        %746 = vmatprep.subr.mxu0 0.0
        %747 = vmatpush2.msra.mxu0 0.0
        %748 = vmatprep.subr.mxu0 0.0
        %749 = vmatpush2.msra.mxu0 0.0
        %750 = vmatprep.subr.mxu0 0.0
        %751 = vmatpush2.msra.mxu0 0.0
        %752 = vmatprep.subr.mxu0 0.0
        %753 = vmatpush2.msra.mxu0 0.0
        %754 = vmatprep.subr.mxu0 0.0
        %755 = vmatpush2.msra.mxu0 0.0
        %756 = vmatprep.subr.mxu0 0.0
        %757 = vmatpush2.msra.mxu0 0.0
        %758 = vmatprep.subr.mxu0 0.0
        %759 = vmatpush2.msra.mxu0 0.0
        %760 = vmatprep.subr.mxu0 0.0
        %761 = vmatpush2.msra.mxu0 0.0
        %762 = vmatprep.subr.mxu0 0.0
        %763 = vmatpush2.msra.mxu0 0.0
        %764 = vmatprep.subr.mxu0 0.0
        %765 = vmatpush2.msra.mxu0 0.0
        %766 = vmatprep.subr.mxu0 0.0
        %767 = vmatpush2.msra.mxu0 0.0
        %768 = vmatprep.subr.mxu0 0.0
        %769 = vmatpush2.msra.mxu0 0.0
        %770 = vmatprep.subr.mxu0 0.0
        %771 = vmatpush2.msra.mxu0 0.0
        %772 = vmatprep.subr.mxu0 0.0
        %773 = vmatpush2.msra.mxu0 0.0
        %774 = vmatprep.subr.mxu0 0.0
        %775 = vmatpush2.msra.mxu0 0.0
        %776 = vmatprep.subr.mxu0 0.0
        %777 = vmatpush2.msra.mxu0 0.0
        %778 = vmatprep.mubr.f32.mxu0 0.0
        %779 = vmatmul.mubr.f32.gmra.mxu0 %v604
        %v780 = vpop.f32.mrf.mxu0
        %v781 = vadd.f32 0.0, %v780
        %v782 = vpop.f32.mrf.mxu0
        %783 = vmatprep.mubr.f32.mxu0 0.0
        %784 = vmatmul.mubr.f32.gmra.mxu0 %v605
        %v785 = vpop.f32.mrf.mxu0
        %v786 = vadd.f32 0.0, %v785
        %v787 = vpop.f32.mrf.mxu0
        %788 = vdwg.mxu0
        %s789 = scalar_lea.vmem [#allocation5], 256
        %v790 = vld [vmem:[%s789] sm:$0xff]
        %v791 = vld [vmem:[%s789 + $0x8] sm:$0xff]
        %v792 = vld [vmem:[%s789 + $0x10] sm:$0xff]
        %v793 = vld [vmem:[%s789 + $0x18] sm:$0xff]
        %v794 = vld [vmem:[%s789 + $0x20] sm:$0xff]
        %v795 = vld [vmem:[%s789 + $0x28] sm:$0xff]
        %v796 = vld [vmem:[%s789 + $0x30] sm:$0xff]
        %v797 = vld [vmem:[%s789 + $0x38] sm:$0xff]
        %v798 = vld [vmem:[%s789 + $0x40] sm:$0xff]
        %v799 = vld [vmem:[%s789 + $0x48] sm:$0xff]
        %v800 = vld [vmem:[%s789 + $0x50] sm:$0xff]
        %v801 = vld [vmem:[%s789 + $0x58] sm:$0xff]
        %v802 = vld [vmem:[%s789 + $0x60] sm:$0xff]
        %v803 = vld [vmem:[%s789 + $0x68] sm:$0xff]
        %v804 = vld [vmem:[%s789 + $0x70] sm:$0xff]
        %v805 = vld [vmem:[%s789 + $0x78] sm:$0xff]
        %806 = vmatprep.subr.mxu0 0.0
        %807 = vmatpush1.msra.mxu0 %v805
        %808 = vmatprep.subr.mxu0 0.0
        %809 = vmatpush1.msra.mxu0 %v804
        %810 = vmatprep.subr.mxu0 0.0
        %811 = vmatpush1.msra.mxu0 %v803
        %812 = vmatprep.subr.mxu0 0.0
        %813 = vmatpush1.msra.mxu0 %v802
        %814 = vmatprep.subr.mxu0 0.0
        %815 = vmatpush1.msra.mxu0 %v801
        %816 = vmatprep.subr.mxu0 0.0
        %817 = vmatpush1.msra.mxu0 %v800
        %818 = vmatprep.subr.mxu0 0.0
        %819 = vmatpush1.msra.mxu0 %v799
        %820 = vmatprep.subr.mxu0 0.0
        %821 = vmatpush1.msra.mxu0 %v798
        %822 = vmatprep.subr.mxu0 0.0
        %823 = vmatpush1.msra.mxu0 %v797
        %824 = vmatprep.subr.mxu0 0.0
        %825 = vmatpush1.msra.mxu0 %v796
        %826 = vmatprep.subr.mxu0 0.0
        %827 = vmatpush1.msra.mxu0 %v795
        %828 = vmatprep.subr.mxu0 0.0
        %829 = vmatpush1.msra.mxu0 %v794
        %830 = vmatprep.subr.mxu0 0.0
        %831 = vmatpush1.msra.mxu0 %v793
        %832 = vmatprep.subr.mxu0 0.0
        %833 = vmatpush1.msra.mxu0 %v792
        %834 = vmatprep.subr.mxu0 0.0
        %835 = vmatpush1.msra.mxu0 %v791
        %836 = vmatprep.subr.mxu0 0.0
        %837 = vmatpush1.msra.mxu0 %v790
        %838 = vmatprep.subr.mxu0 0.0
        %839 = vmatpush2.msra.mxu0 0.0
        %840 = vmatprep.subr.mxu0 0.0
        %841 = vmatpush2.msra.mxu0 0.0
        %842 = vmatprep.subr.mxu0 0.0
        %843 = vmatpush2.msra.mxu0 0.0
        %844 = vmatprep.subr.mxu0 0.0
        %845 = vmatpush2.msra.mxu0 0.0
        %846 = vmatprep.subr.mxu0 0.0
        %847 = vmatpush2.msra.mxu0 0.0
        %848 = vmatprep.subr.mxu0 0.0
        %849 = vmatpush2.msra.mxu0 0.0
        %850 = vmatprep.subr.mxu0 0.0
        %851 = vmatpush2.msra.mxu0 0.0
        %852 = vmatprep.subr.mxu0 0.0
        %853 = vmatpush2.msra.mxu0 0.0
        %854 = vmatprep.subr.mxu0 0.0
        %855 = vmatpush2.msra.mxu0 0.0
        %856 = vmatprep.subr.mxu0 0.0
        %857 = vmatpush2.msra.mxu0 0.0
        %858 = vmatprep.subr.mxu0 0.0
        %859 = vmatpush2.msra.mxu0 0.0
        %860 = vmatprep.subr.mxu0 0.0
        %861 = vmatpush2.msra.mxu0 0.0
        %862 = vmatprep.subr.mxu0 0.0
        %863 = vmatpush2.msra.mxu0 0.0
        %864 = vmatprep.subr.mxu0 0.0
        %865 = vmatpush2.msra.mxu0 0.0
        %866 = vmatprep.subr.mxu0 0.0
        %867 = vmatpush2.msra.mxu0 0.0
        %868 = vmatprep.subr.mxu0 0.0
        %869 = vmatpush2.msra.mxu0 0.0
        %870 = vmatprep.mubr.f32.mxu0 0.0
        %871 = vmatmul.mubr.f32.gmra.mxu0 %v604
        %v872 = vpop.f32.mrf.mxu0
        %v873 = vadd.f32 0.0, %v872
        %v874 = vpop.f32.mrf.mxu0
        %875 = vmatprep.mubr.f32.mxu0 0.0
        %876 = vmatmul.mubr.f32.gmra.mxu0 %v605
        %v877 = vpop.f32.mrf.mxu0
        %v878 = vadd.f32 0.0, %v877
        %v879 = vpop.f32.mrf.mxu0
        %880 = vdwg.mxu0
        %v881 = vlaneseq
        %v882 = vshrl.u32 %v881, 7
        %v883 = vadd.s32 %v882, 8
        %v884 = vlaneseq
        %v885 = vand.u32 %v884, 127
        %v886 = vadd.s32 %v885, 1
        %vm887 = vcmp.eq.s32.totalorder %v882, %v886
        %vm888 = vcmp.eq.s32.totalorder %v883, %v886
        %v889 = vsel %vm887, 1, 0
        %v890 = vsel %vm888, 1, 0
        %v891 = vcvt.s32.f32 %v889
        %v892 = vcvt.s32.f32 %v890
        %v893 = vadd.s32 %v882, 1
        %v894 = vadd.s32 %v883, 1
        %vm895 = vcmp.eq.s32.totalorder %v893, %v885
        %vm896 = vcmp.eq.s32.totalorder %v894, %v885
        %v897 = vsel %vm895, 1, 0
        %v898 = vsel %vm896, 1, 0
        %v899 = vcvt.s32.f32 %v897
        %v900 = vcvt.s32.f32 %v898
        %v901 = vld [vmem:[%s4] sm:$0x1]
        %v903 = vlaneseq
        %v904 = vshrl.u32 %v903, 7
        %v905 = vsub.s32 0, %v904
        %v906 = vrot.slane %v901, %v905
        %v908 = vadd.f32 %v906, %v781
        %v909 = vadd.f32 %v906, %v786
        %v911 = vsel %vm290, %v891, 0
        %v914 = vsel %vm290, %v892, 0
        %916 = vmatprep.subr.mxu0 0.0
        %917 = vmatpush1.msra.mxu0 0.0
        %918 = vmatprep.subr.mxu0 0.0
        %919 = vmatpush1.msra.mxu0 0.0
        %920 = vmatprep.subr.mxu0 0.0
        %921 = vmatpush1.msra.mxu0 0.0
        %922 = vmatprep.subr.mxu0 0.0
        %923 = vmatpush1.msra.mxu0 0.0
        %924 = vmatprep.subr.mxu0 0.0
        %925 = vmatpush1.msra.mxu0 0.0
        %926 = vmatprep.subr.mxu0 0.0
        %927 = vmatpush1.msra.mxu0 0.0
        %928 = vmatprep.subr.mxu0 0.0
        %929 = vmatpush1.msra.mxu0 0.0
        %930 = vmatprep.subr.mxu0 0.0
        %931 = vmatpush1.msra.mxu0 0.0
        %932 = vmatprep.subr.mxu0 0.0
        %933 = vmatpush1.msra.mxu0 0.0
        %934 = vmatprep.subr.mxu0 0.0
        %935 = vmatpush1.msra.mxu0 0.0
        %936 = vmatprep.subr.mxu0 0.0
        %937 = vmatpush1.msra.mxu0 0.0
        %938 = vmatprep.subr.mxu0 0.0
        %939 = vmatpush1.msra.mxu0 0.0
        %940 = vmatprep.subr.mxu0 0.0
        %941 = vmatpush1.msra.mxu0 0.0
        %942 = vmatprep.subr.mxu0 0.0
        %943 = vmatpush1.msra.mxu0 0.0
        %944 = vmatprep.subr.mxu0 0.0
        %945 = vmatpush1.msra.mxu0 %v694
        %946 = vmatprep.subr.mxu0 0.0
        %947 = vmatpush1.msra.mxu0 %v689
        %948 = vmatprep.subr.mxu0 0.0
        %949 = vmatpush2.msra.mxu0 0.0
        %950 = vmatprep.subr.mxu0 0.0
        %951 = vmatpush2.msra.mxu0 0.0
        %952 = vmatprep.subr.mxu0 0.0
        %953 = vmatpush2.msra.mxu0 0.0
        %954 = vmatprep.subr.mxu0 0.0
        %955 = vmatpush2.msra.mxu0 0.0
        %956 = vmatprep.subr.mxu0 0.0
        %957 = vmatpush2.msra.mxu0 0.0
        %958 = vmatprep.subr.mxu0 0.0
        %959 = vmatpush2.msra.mxu0 0.0
        %960 = vmatprep.subr.mxu0 0.0
        %961 = vmatpush2.msra.mxu0 0.0
        %962 = vmatprep.subr.mxu0 0.0
        %963 = vmatpush2.msra.mxu0 0.0
        %964 = vmatprep.subr.mxu0 0.0
        %965 = vmatpush2.msra.mxu0 0.0
        %966 = vmatprep.subr.mxu0 0.0
        %967 = vmatpush2.msra.mxu0 0.0
        %968 = vmatprep.subr.mxu0 0.0
        %969 = vmatpush2.msra.mxu0 0.0
        %970 = vmatprep.subr.mxu0 0.0
        %971 = vmatpush2.msra.mxu0 0.0
        %972 = vmatprep.subr.mxu0 0.0
        %973 = vmatpush2.msra.mxu0 0.0
        %974 = vmatprep.subr.mxu0 0.0
        %975 = vmatpush2.msra.mxu0 0.0
        %976 = vmatprep.subr.mxu0 0.0
        %977 = vmatpush2.msra.mxu0 0.0
        %978 = vmatprep.subr.mxu0 0.0
        %979 = vmatpush2.msra.mxu0 0.0
        %980 = vmatprep.mubr.f32.mxu0 0.0
        %981 = vmatmul.mubr.f32.gmra.mxu0 %v911
        %v982 = vpop.f32.mrf.mxu0
        %v983 = vadd.f32 0.0, %v982
        %v984 = vpop.f32.mrf.mxu0
        %985 = vmatprep.mubr.f32.mxu0 0.0
        %986 = vmatmul.mubr.f32.gmra.mxu0 %v914
        %v987 = vpop.f32.mrf.mxu0
        %v988 = vadd.f32 0.0, %v987
        %v989 = vpop.f32.mrf.mxu0
        %990 = vdwg.mxu0
        %v991 = vadd.f32 %v908, %v983
        %v992 = vadd.f32 %v909, %v988
        %v994 = vsel %vm290, %v899, 0
        %v997 = vsel %vm290, %v900, 0
        %999 = vmatprep.subr.mxu0 0.0
        %1000 = vmatpush1.msra.mxu0 0.0
        %1001 = vmatprep.subr.mxu0 0.0
        %1002 = vmatpush1.msra.mxu0 0.0
        %1003 = vmatprep.subr.mxu0 0.0
        %1004 = vmatpush1.msra.mxu0 0.0
        %1005 = vmatprep.subr.mxu0 0.0
        %1006 = vmatpush1.msra.mxu0 0.0
        %1007 = vmatprep.subr.mxu0 0.0
        %1008 = vmatpush1.msra.mxu0 0.0
        %1009 = vmatprep.subr.mxu0 0.0
        %1010 = vmatpush1.msra.mxu0 0.0
        %1011 = vmatprep.subr.mxu0 0.0
        %1012 = vmatpush1.msra.mxu0 0.0
        %1013 = vmatprep.subr.mxu0 0.0
        %1014 = vmatpush1.msra.mxu0 0.0
        %1015 = vmatprep.subr.mxu0 0.0
        %1016 = vmatpush1.msra.mxu0 0.0
        %1017 = vmatprep.subr.mxu0 0.0
        %1018 = vmatpush1.msra.mxu0 0.0
        %1019 = vmatprep.subr.mxu0 0.0
        %1020 = vmatpush1.msra.mxu0 0.0
        %1021 = vmatprep.subr.mxu0 0.0
        %1022 = vmatpush1.msra.mxu0 0.0
        %1023 = vmatprep.subr.mxu0 0.0
        %1024 = vmatpush1.msra.mxu0 0.0
        %1025 = vmatprep.subr.mxu0 0.0
        %1026 = vmatpush1.msra.mxu0 0.0
        %1027 = vmatprep.subr.mxu0 0.0
        %1028 = vmatpush1.msra.mxu0 %v878
        %1029 = vmatprep.subr.mxu0 0.0
        %1030 = vmatpush1.msra.mxu0 %v873
        %1031 = vmatprep.subr.mxu0 0.0
        %1032 = vmatpush2.msra.mxu0 0.0
        %1033 = vmatprep.subr.mxu0 0.0
        %1034 = vmatpush2.msra.mxu0 0.0
        %1035 = vmatprep.subr.mxu0 0.0
        %1036 = vmatpush2.msra.mxu0 0.0
        %1037 = vmatprep.subr.mxu0 0.0
        %1038 = vmatpush2.msra.mxu0 0.0
        %1039 = vmatprep.subr.mxu0 0.0
        %1040 = vmatpush2.msra.mxu0 0.0
        %1041 = vmatprep.subr.mxu0 0.0
        %1042 = vmatpush2.msra.mxu0 0.0
        %1043 = vmatprep.subr.mxu0 0.0
        %1044 = vmatpush2.msra.mxu0 0.0
        %1045 = vmatprep.subr.mxu0 0.0
        %1046 = vmatpush2.msra.mxu0 0.0
        %1047 = vmatprep.subr.mxu0 0.0
        %1048 = vmatpush2.msra.mxu0 0.0
        %1049 = vmatprep.subr.mxu0 0.0
        %1050 = vmatpush2.msra.mxu0 0.0
        %1051 = vmatprep.subr.mxu0 0.0
        %1052 = vmatpush2.msra.mxu0 0.0
        %1053 = vmatprep.subr.mxu0 0.0
        %1054 = vmatpush2.msra.mxu0 0.0
        %1055 = vmatprep.subr.mxu0 0.0
        %1056 = vmatpush2.msra.mxu0 0.0
        %1057 = vmatprep.subr.mxu0 0.0
        %1058 = vmatpush2.msra.mxu0 0.0
        %1059 = vmatprep.subr.mxu0 0.0
        %1060 = vmatpush2.msra.mxu0 0.0
        %1061 = vmatprep.subr.mxu0 0.0
        %1062 = vmatpush2.msra.mxu0 0.0
        %1063 = vmatprep.mubr.f32.mxu0 0.0
        %1064 = vmatmul.mubr.f32.gmra.mxu0 %v994
        %v1065 = vpop.f32.mrf.mxu0
        %v1066 = vadd.f32 0.0, %v1065
        %v1067 = vpop.f32.mrf.mxu0
        %1068 = vmatprep.mubr.f32.mxu0 0.0
        %1069 = vmatmul.mubr.f32.gmra.mxu0 %v997
        %v1070 = vpop.f32.mrf.mxu0
        %v1071 = vadd.f32 0.0, %v1070
        %v1072 = vpop.f32.mrf.mxu0
        %1073 = vdwg.mxu0
        %v1074 = vadd.f32 %v991, %v1066
        %v1075 = vadd.f32 %v992, %v1071
        %v1082 = vrot.slane %v253, 1
        %v1083 = vrot.slane %v255, 1
        %v1084 = vsel %vm397, %v1082, %v1083
        %v1085 = vrot.slane %v254, 1
        %v1086 = vrot.slane %v256, 1
        %v1087 = vsel %vm397, %v1085, %v1086
        %v1088 = vrot.slane %v257, 1
        %v1089 = vsel %vm397, %v1083, %v1088
        %v1090 = vrot.slane %v258, 1
        %v1091 = vsel %vm397, %v1086, %v1090
        %1092 = vrot.lane.b32.xlu0 %v1084, 120
        %v1093 = vpop.permute.xlu0 %1092
        %1094 = vrot.lane.b32.xlu0 %v1087, 120
        %v1095 = vpop.permute.xlu0 %1094
        %1096 = vrot.lane.b32.xlu0 %v1089, 120
        %v1097 = vpop.permute.xlu0 %1096
        %1098 = vrot.lane.b32.xlu0 %v1091, 120
        %v1099 = vpop.permute.xlu0 %1098
        %vm1100 = vcmask 982016
        %v1101 = vsel %vm1100, %v1093, %v1095
        %v1102 = vsel %vm1100, %v1097, %v1099
        %v1105 = vadd.f32 %v1074, %v1101
        %v1106 = vadd.f32 %v1075, %v1102
        %1107 = vst [vmem:[%s247] sm:$0xff] %v1105
        %1108 = vst [vmem:[%s247 + $0x8] sm:$0xff] %v1106
        %s1109 = sand.u32 %s139, 1
        %s1110 = scalar_lea.sflag [#allocation4], %s1109
        %s1111 = sand.u32 %s139, 1
        %s1112 = smul.addr %s1111, 16
        %s1113 = scalar_lea.vmem [#allocation7], %s1112
        // Predicated region
        $region49: #{tpu_custom_call.1} parent=39 // pred_check
          %p1114 = pneg %p149
        $region50: #{tpu_custom_call.1} parent=39 // pred_check_branch
          %1116 = sbr.rel (%p1114) target = $region52
        $region51: #{tpu_custom_call.1} parent=39 // pred_region
          %s1118 = ssub.s32 256, 256
          %1119 = vsyncadd %s1110, %s1118
          %s1120 = smul.addr %s21, 2
          %s1121 = smul.addr %s1120, 128
          %s1122 = scalar_lea.hbm %s5, %s1121
          %s1123 = sshll.u32 %s1113, 4
          %s1124 = int_to_ptr.vmem [resolvable:$true] %s1123
          %1129 = dma.vmem_to_hbm [thread:$0]  %s1124, 256, %s1122, %s1110, 128, 128, 8
        $region52: #{tpu_custom_call.1} parent=39 // pred_fallthru
          _
      $region40: #{tpu_custom_call.1} parent=5 // pred_fallthru
        _
      %p1130 = scmp.le.s32.totalorder 2, %s16
      // Predicated region
      $region53: #{tpu_custom_call.1} parent=5 // pred_check
        %p1131 = pneg %p1130
      $region54: #{tpu_custom_call.1} parent=5 // pred_check_branch
        %1133 = sbr.rel (%p1131) target = $region56
      $region55: #{tpu_custom_call.1} parent=5 // pred_region
        %s1134 = ssub.s32 %s16, 2
        // Predicated region
        $region57: #{tpu_custom_call.1} parent=55 // pred_check
          %p1135 = pneg %p155
        $region58: #{tpu_custom_call.1} parent=55 // pred_check_branch
          %1137 = sbr.rel (%p1135) target = $region60
        $region59: #{tpu_custom_call.1} parent=55 // pred_region
          %s1138 = sand.u32 %s140, 1
          %s1139 = scalar_lea.sflag [#allocation4], %s1138
          %s1140 = sand.u32 %s140, 1
          %s1141 = smul.addr %s1140, 16
          %s1142 = scalar_lea.vmem [#allocation7], %s1141
          %1143 = dma.done %s1139, 256
        $region60: #{tpu_custom_call.1} parent=55 // pred_fallthru
          _
      $region56: #{tpu_custom_call.1} parent=5 // pred_fallthru
        _
    $region6: #{tpu_custom_call.1} parent=1 // loop_footer
      %s20 = sadd.s32 1, %s16
    $region7: #{tpu_custom_call.1} parent=1 // loop_footer_branch
      %15 = sbr.rel target = $region3
    $region8: #{tpu_custom_call.1} parent=1 // loop_exit
      _
    %1144 = vsyncpa [#allocation3], 1
    %s1145 = scalar_lea.sflag [#allocation3], 1
    %1146 = vsyncpa %s1145, 1
    %1147 = vsyncpa [#allocation6], 1
    %1148 = vsyncpa [#allocation4], 1
    %s1149 = scalar_lea.sflag [#allocation4], 1
    %1150 = vsyncpa %s1149, 1

</llo_original>
